<compile_context>
chip_gen: v6e
topology: v6e:2x2x1
jax: 0.10.0
libtpu: 0.0.40
codegen_flags: <defaults>
</compile_context>

<pallas_src>
import functools
import math

import jax
import jax.numpy as jnp
from jax import lax
from jax.experimental import pallas as pl
from jax.experimental.pallas import tpu as pltpu


def _mha_fused_kernel(x_ref, w_qkv_ref, b_qkv_ref, w_out_ref, b_out_ref,
                      out_ref, ctx_ref, *, num_heads, head_dim):
    """One batch element per grid step; all heads fused inside.

    x_ref     : (1, T, E)   compute-dtype activations of batch b
    w_qkv_ref : (E, 3H)     fused pre-transposed QKV weight, laid out [Q-heads|K-heads|V-heads],
                            with 1/sqrt(head_dim) folded into the Q columns
    b_qkv_ref : (1, 3H)     fused QKV bias (f32, scale folded into the Q third)
    w_out_ref : (H, E)      out_proj weight, pre-transposed
    b_out_ref : (1, E)      out_proj bias (f32)
    out_ref   : (1, T, E)   f32 output block
    ctx_ref   : (T, H)      f32 per-head context scratch (head-major columns)
    """
    H = num_heads * head_dim
    x = x_ref[0]                                   # (T, E), compute dtype
    cdt = x.dtype

    # Fused full-width QKV projection (N = 3H): one MXU matmul, f32 accumulation + bias.
    qkv = jnp.dot(x, w_qkv_ref[...], preferred_element_type=jnp.float32)
    qkv = (qkv + b_qkv_ref[...]).astype(cdt)       # (T, 3H), back to compute dtype

    for h in range(num_heads):                     # static unroll over heads
        lo = h * head_dim
        q = qkv[:, lo:lo + head_dim]                               # already scaled
        k = qkv[:, H + lo:H + lo + head_dim]
        v = qkv[:, 2 * H + lo:2 * H + lo + head_dim]

        # Scores: contract head_dim of both operands -> Q K^T, no materialized transpose.
        s = lax.dot_general(q, k, (((1,), (1,)), ((), ())),
                            preferred_element_type=jnp.float32)    # (T, T) f32

        # Numerically stable softmax; normalization deferred to after the PV matmul.
        s = s - jnp.max(s, axis=-1, keepdims=True)
        p = jnp.exp(s)
        denom = jnp.sum(p, axis=-1, keepdims=True)                 # >= 1 (row max subtracted)
        inv = pl.reciprocal(denom, approx=True)
        inv = inv * (2.0 - denom * inv)                            # Newton step -> ~f32 exact

        ctx = jnp.dot(p.astype(cdt), v, preferred_element_type=jnp.float32)   # (T, hd) f32
        ctx_ref[:, lo:lo + head_dim] = ctx * inv                   # (T, hd) normalize here

    # Single full-depth (K = H) output projection + bias.
    out = jnp.dot(ctx_ref[...].astype(cdt), w_out_ref[...],
                  preferred_element_type=jnp.float32)              # (T, E) f32
    out_ref[0] = out + b_out_ref[...]


def prepare_attention_params(wq, bq, wk, bk, wv, bv, wo, bo, num_heads,
                             compute_dtype=jnp.bfloat16):
    """One-time weight re-layout. Call at model-load time, NOT per forward call."""
    H, E = wq.shape
    assert H % num_heads == 0
    head_dim = H // num_heads
    scale = 1.0 / math.sqrt(head_dim)

    # Fused, pre-transposed QKV weight: (E, 3H), [Q-heads | K-heads | V-heads],
    # 1/sqrt(head_dim) folded into the Q columns (and into b_q).
    w_qkv = jnp.concatenate([wq.T * scale, wk.T, wv.T], axis=-1)          # (E, 3H)
    b_qkv = jnp.concatenate([bq * scale, bk, bv]).reshape(1, 3 * H)       # (1, 3H)
    w_out = wo.T                                                          # (H, E)
    b_out = bo.reshape(1, E)                                              # (1, E)

    return dict(
        w_qkv=w_qkv.astype(compute_dtype),
        b_qkv=b_qkv.astype(jnp.float32),
        w_out=w_out.astype(compute_dtype),
        b_out=b_out.astype(jnp.float32),
        num_heads=num_heads,
        head_dim=head_dim,
        compute_dtype=compute_dtype,
    )


def attention_forward(q_x, params, *, vmem_limit_bytes=None):
    """q_x: (B, T, E) batch-first. Returns (T, B, E) like the PyTorch wrapper."""
    B, T, E = q_x.shape
    nh, hd = params["num_heads"], params["head_dim"]
    H = nh * hd
    cdt = params["compute_dtype"]

    kernel = functools.partial(_mha_fused_kernel, num_heads=nh, head_dim=hd)

    cparams = dict(dimension_semantics=("parallel",))
    if vmem_limit_bytes is not None:
        # For large (T, E, H) configs (e.g. CLIP-L on v7x's 64 MiB VMEM) set this
        # explicitly with headroom; defaults are fine for small/medium shapes.
        cparams["vmem_limit_bytes"] = vmem_limit_bytes

    out_bte = pl.pallas_call(
        kernel,
        out_shape=jax.ShapeDtypeStruct((B, T, E), jnp.float32),
        grid_spec=pltpu.PrefetchScalarGridSpec(
            num_scalar_prefetch=0,
            grid=(B,),
            in_specs=[
                pl.BlockSpec((1, T, E), lambda b: (b, 0, 0)),      # x, per batch
                pl.BlockSpec((E, 3 * H), lambda b: (0, 0)),        # fused QKV weight (resident)
                pl.BlockSpec((1, 3 * H), lambda b: (0, 0)),        # fused QKV bias
                pl.BlockSpec((H, E), lambda b: (0, 0)),            # out-proj weight (resident)
                pl.BlockSpec((1, E), lambda b: (0, 0)),            # out-proj bias
            ],
            out_specs=pl.BlockSpec((1, T, E), lambda b: (b, 0, 0)),
            scratch_shapes=[pltpu.VMEM((T, H), jnp.float32)],      # per-batch context
        ),
        compiler_params=pltpu.CompilerParams(**cparams),
    )(q_x.astype(cdt), params["w_qkv"], params["b_qkv"],
      params["w_out"], params["b_out"])

    # The PyTorch wrapper returns a seq-first tensor (T, B, E) when batch_first=True.
    # Kept outside the kernel: the lane-dense (1, T, E) store + one XLA swapaxes is the
    # safe, fast form (a (T, 1, E) block would put a sub-8 dim in the sublane slot).
    return jnp.transpose(out_bte, (1, 0, 2))


def _reference(q_x, wq, bq, wk, bk, wv, bv, wo, bo, num_heads):
    """Pure-JAX f32 reference mirroring the PyTorch forward (mask=None, dropout=0)."""
    B, T, E = q_x.shape
    H = wq.shape[0]
    hd = H // num_heads
    q = q_x @ wq.T + bq
    k = q_x @ wk.T + bk
    v = q_x @ wv.T + bv
    r = lambda t: t.reshape(B, T, num_heads, hd).transpose(0, 2, 1, 3)
    q, k, v = r(q), r(k), r(v)
    attn = jnp.einsum("bhqd,bhkd->bhqk", q, k) / math.sqrt(hd)
    attn = jax.nn.softmax(attn, axis=-1)
    ctx = jnp.einsum("bhqk,bhkd->bhqd", attn, v)
    ctx = ctx.transpose(0, 2, 1, 3).reshape(B, T, H)
    out = ctx @ wo.T + bo
    return out.transpose(1, 0, 2)                               # (T, B, E)


if __name__ == "__main__":
    B, T, E = 2, 8, 32
    num_heads = 4
    H = E  # hidden_dim = out_dim // 3 = E for nn.MultiheadAttention

    key = jax.random.PRNGKey(0)
    ks = jax.random.split(key, 5)
    in_proj_weight = jax.random.normal(ks[0], (3 * H, E), jnp.float32) * 0.05
    in_proj_bias   = jax.random.normal(ks[1], (3 * H,), jnp.float32) * 0.02
    wo             = jax.random.normal(ks[2], (E, H), jnp.float32) * 0.05
    bo             = jax.random.normal(ks[3], (E,), jnp.float32) * 0.02
    q_x            = jax.random.normal(ks[4], (B, T, E), jnp.float32)

    wq, wk, wv = in_proj_weight[:H], in_proj_weight[H:2 * H], in_proj_weight[2 * H:]
    bq, bk, bv = in_proj_bias[:H], in_proj_bias[H:2 * H], in_proj_bias[2 * H:]

    ref = _reference(q_x, wq, bq, wk, bk, wv, bv, wo, bo, num_heads)

    # --- f32 compute path: matches the f32 PyTorch module closely ---
    params_f32 = prepare_attention_params(wq, bq, wk, bk, wv, bv, wo, bo, num_heads,
                                          compute_dtype=jnp.float32)
    out_f32 = jax.block_until_ready(attention_forward(q_x, params_f32))
    assert out_f32.shape == (T, B, E), out_f32.shape
    assert jnp.allclose(out_f32, ref, rtol=2e-4, atol=2e-4), "f32 path mismatch vs reference"

    # --- default bf16 MXU path (f32 accumulation, f32 softmax): perf configuration ---
    params_bf16 = prepare_attention_params(wq, bq, wk, bk, wv, bv, wo, bo, num_heads,
                                           compute_dtype=jnp.bfloat16)
    out_bf16 = jax.block_until_ready(attention_forward(q_x, params_bf16))
    assert out_bf16.shape == (T, B, E), out_bf16.shape
    assert jnp.allclose(out_bf16, ref, rtol=5e-2, atol=1e-2), "bf16 path mismatch vs reference"

    print("KERNEL_OK")
</pallas_src>

<mosaic_0001>
module attributes {stable_mosaic.version = 11 : i64} {
  func.func @_mha_fused_kernel(%arg0: i32, %arg1: memref<1x8x32xf32, #tpu.memory_space<vmem>>, %arg2: memref<32x96xf32, #tpu.memory_space<vmem>>, %arg3: memref<1x96xf32, #tpu.memory_space<vmem>>, %arg4: memref<32x32xf32, #tpu.memory_space<vmem>>, %arg5: memref<1x32xf32, #tpu.memory_space<vmem>>, %arg6: memref<1x8x32xf32, #tpu.memory_space<vmem>>, %arg7: memref<8x32xf32, #tpu.memory_space<vmem>>) attributes {dimension_semantics = [#tpu.dimension_semantics<parallel>], iteration_bounds = array<i64: 2>, scalar_prefetch = 0 : i64, scratch_operands = 1 : i64, tpu.core_type = #tpu.core_type<tc>, window_params = [{transform_indices = @transform_0, window_bounds = array<i64: 1, 8, 32>}, {pipeline_mode = #tpu.pipeline_mode<synchronous>, transform_indices = @transform_1, window_bounds = array<i64: 32, 96>}, {pipeline_mode = #tpu.pipeline_mode<synchronous>, transform_indices = @transform_2, window_bounds = array<i64: 1, 96>}, {pipeline_mode = #tpu.pipeline_mode<synchronous>, transform_indices = @transform_3, window_bounds = array<i64: 32, 32>}, {pipeline_mode = #tpu.pipeline_mode<synchronous>, transform_indices = @transform_4, window_bounds = array<i64: 1, 32>}, {transform_indices = @transform_5, window_bounds = array<i64: 1, 8, 32>}]} {
    %c0 = arith.constant 0 : index
    %c0_0 = arith.constant 0 : index
    %c0_1 = arith.constant 0 : index
    %0 = vector.load %arg1[%c0, %c0_0, %c0_1] : memref<1x8x32xf32, #tpu.memory_space<vmem>>, vector<1x8x32xf32>
    %1 = vector.shape_cast %0 : vector<1x8x32xf32> to vector<8x32xf32>
    %c0_2 = arith.constant 0 : index
    %c0_3 = arith.constant 0 : index
    %2 = vector.load %arg2[%c0_2, %c0_3] : memref<32x96xf32, #tpu.memory_space<vmem>>, vector<32x96xf32>
    %cst = arith.constant dense<0.000000e+00> : vector<8x96xf32>
    %3 = tpu.matmul %1, %2, %cst {dimension_numbers = #tpu.dot_dimension_numbers<[1], [0], [0], [1], [0, 0, 1, 1], [], []>} : vector<8x32xf32>, vector<32x96xf32>, vector<8x96xf32> -> vector<8x96xf32>
    %c0_4 = arith.constant 0 : index
    %c0_5 = arith.constant 0 : index
    %4 = vector.load %arg3[%c0_4, %c0_5] : memref<1x96xf32, #tpu.memory_space<vmem>>, vector<1x96xf32>
    %5 = vector.broadcast %4 : vector<1x96xf32> to vector<8x96xf32>
    %6 = arith.addf %3, %5 : vector<8x96xf32>
    %7 = vector.extract_strided_slice %6 {offsets = [0, 0], sizes = [8, 8], strides = [1, 1]} : vector<8x96xf32> to vector<8x8xf32>
    %8 = vector.extract_strided_slice %6 {offsets = [0, 32], sizes = [8, 8], strides = [1, 1]} : vector<8x96xf32> to vector<8x8xf32>
    %9 = vector.extract_strided_slice %6 {offsets = [0, 64], sizes = [8, 8], strides = [1, 1]} : vector<8x96xf32> to vector<8x8xf32>
    %cst_6 = arith.constant dense<0.000000e+00> : vector<8x8xf32>
    %10 = tpu.matmul %7, %8, %cst_6 {dimension_numbers = #tpu.dot_dimension_numbers<[1], [1], [0], [0], [0, 0, 1, 0], [], []>} : vector<8x8xf32>, vector<8x8xf32>, vector<8x8xf32> -> vector<8x8xf32>
    %cst_7 = arith.constant dense<0xFF800000> : vector<8xf32>
    %11 = vector.multi_reduction <maximumf>, %10, %cst_7 [1] : vector<8x8xf32> to vector<8xf32>
    %12 = vector.shape_cast %11 : vector<8xf32> to vector<8x1xf32>
    %13 = vector.broadcast %12 : vector<8x1xf32> to vector<8x8xf32>
    %14 = arith.subf %10, %13 : vector<8x8xf32>
    %15 = math.exp %14 : vector<8x8xf32>
    %cst_8 = arith.constant dense<0.000000e+00> : vector<8xf32>
    %16 = vector.multi_reduction <add>, %15, %cst_8 [1] : vector<8x8xf32> to vector<8xf32>
    %17 = vector.shape_cast %16 : vector<8xf32> to vector<8x1xf32>
    %18 = tpu.reciprocal %17 {approx = true} : vector<8x1xf32> -> vector<8x1xf32>
    %19 = arith.mulf %17, %18 : vector<8x1xf32>
    %cst_9 = arith.constant 2.000000e+00 : f32
    %20 = vector.broadcast %cst_9 : f32 to vector<8x1xf32>
    %21 = arith.subf %20, %19 : vector<8x1xf32>
    %22 = arith.mulf %18, %21 : vector<8x1xf32>
    %cst_10 = arith.constant dense<0.000000e+00> : vector<8x8xf32>
    %23 = tpu.matmul %15, %9, %cst_10 {dimension_numbers = #tpu.dot_dimension_numbers<[1], [0], [0], [1], [0, 0, 1, 1], [], []>} : vector<8x8xf32>, vector<8x8xf32>, vector<8x8xf32> -> vector<8x8xf32>
    %24 = vector.broadcast %22 : vector<8x1xf32> to vector<8x8xf32>
    %25 = arith.mulf %23, %24 : vector<8x8xf32>
    %c0_11 = arith.constant 0 : index
    %c0_12 = arith.constant 0 : index
    %26 = vector.load %arg7[%c0_11, %c0_12] : memref<8x32xf32, #tpu.memory_space<vmem>>, vector<8x8xf32>
    tpu.vector_store %arg7[%c0_11, %c0_12], %25 {strides = array<i32>} : memref<8x32xf32, #tpu.memory_space<vmem>>, vector<8x8xf32>,
    %27 = vector.extract_strided_slice %6 {offsets = [0, 8], sizes = [8, 8], strides = [1, 1]} : vector<8x96xf32> to vector<8x8xf32>
    %28 = vector.extract_strided_slice %6 {offsets = [0, 40], sizes = [8, 8], strides = [1, 1]} : vector<8x96xf32> to vector<8x8xf32>
    %29 = vector.extract_strided_slice %6 {offsets = [0, 72], sizes = [8, 8], strides = [1, 1]} : vector<8x96xf32> to vector<8x8xf32>
    %cst_13 = arith.constant dense<0.000000e+00> : vector<8x8xf32>
    %30 = tpu.matmul %27, %28, %cst_13 {dimension_numbers = #tpu.dot_dimension_numbers<[1], [1], [0], [0], [0, 0, 1, 0], [], []>} : vector<8x8xf32>, vector<8x8xf32>, vector<8x8xf32> -> vector<8x8xf32>
    %cst_14 = arith.constant dense<0xFF800000> : vector<8xf32>
    %31 = vector.multi_reduction <maximumf>, %30, %cst_14 [1] : vector<8x8xf32> to vector<8xf32>
    %32 = vector.shape_cast %31 : vector<8xf32> to vector<8x1xf32>
    %33 = vector.broadcast %32 : vector<8x1xf32> to vector<8x8xf32>
    %34 = arith.subf %30, %33 : vector<8x8xf32>
    %35 = math.exp %34 : vector<8x8xf32>
    %cst_15 = arith.constant dense<0.000000e+00> : vector<8xf32>
    %36 = vector.multi_reduction <add>, %35, %cst_15 [1] : vector<8x8xf32> to vector<8xf32>
    %37 = vector.shape_cast %36 : vector<8xf32> to vector<8x1xf32>
    %38 = tpu.reciprocal %37 {approx = true} : vector<8x1xf32> -> vector<8x1xf32>
    %39 = arith.mulf %37, %38 : vector<8x1xf32>
    %cst_16 = arith.constant 2.000000e+00 : f32
    %40 = vector.broadcast %cst_16 : f32 to vector<8x1xf32>
    %41 = arith.subf %40, %39 : vector<8x1xf32>
    %42 = arith.mulf %38, %41 : vector<8x1xf32>
    %cst_17 = arith.constant dense<0.000000e+00> : vector<8x8xf32>
    %43 = tpu.matmul %35, %29, %cst_17 {dimension_numbers = #tpu.dot_dimension_numbers<[1], [0], [0], [1], [0, 0, 1, 1], [], []>} : vector<8x8xf32>, vector<8x8xf32>, vector<8x8xf32> -> vector<8x8xf32>
    %44 = vector.broadcast %42 : vector<8x1xf32> to vector<8x8xf32>
    %45 = arith.mulf %43, %44 : vector<8x8xf32>
    %c0_18 = arith.constant 0 : index
    %c8 = arith.constant 8 : index
    %46 = vector.load %arg7[%c0_18, %c8] : memref<8x32xf32, #tpu.memory_space<vmem>>, vector<8x8xf32>
    tpu.vector_store %arg7[%c0_18, %c8], %45 {strides = array<i32>} : memref<8x32xf32, #tpu.memory_space<vmem>>, vector<8x8xf32>,
    %47 = vector.extract_strided_slice %6 {offsets = [0, 16], sizes = [8, 8], strides = [1, 1]} : vector<8x96xf32> to vector<8x8xf32>
    %48 = vector.extract_strided_slice %6 {offsets = [0, 48], sizes = [8, 8], strides = [1, 1]} : vector<8x96xf32> to vector<8x8xf32>
    %49 = vector.extract_strided_slice %6 {offsets = [0, 80], sizes = [8, 8], strides = [1, 1]} : vector<8x96xf32> to vector<8x8xf32>
    %cst_19 = arith.constant dense<0.000000e+00> : vector<8x8xf32>
    %50 = tpu.matmul %47, %48, %cst_19 {dimension_numbers = #tpu.dot_dimension_numbers<[1], [1], [0], [0], [0, 0, 1, 0], [], []>} : vector<8x8xf32>, vector<8x8xf32>, vector<8x8xf32> -> vector<8x8xf32>
    %cst_20 = arith.constant dense<0xFF800000> : vector<8xf32>
    %51 = vector.multi_reduction <maximumf>, %50, %cst_20 [1] : vector<8x8xf32> to vector<8xf32>
    %52 = vector.shape_cast %51 : vector<8xf32> to vector<8x1xf32>
    %53 = vector.broadcast %52 : vector<8x1xf32> to vector<8x8xf32>
    %54 = arith.subf %50, %53 : vector<8x8xf32>
    %55 = math.exp %54 : vector<8x8xf32>
    %cst_21 = arith.constant dense<0.000000e+00> : vector<8xf32>
    %56 = vector.multi_reduction <add>, %55, %cst_21 [1] : vector<8x8xf32> to vector<8xf32>
    %57 = vector.shape_cast %56 : vector<8xf32> to vector<8x1xf32>
    %58 = tpu.reciprocal %57 {approx = true} : vector<8x1xf32> -> vector<8x1xf32>
    %59 = arith.mulf %57, %58 : vector<8x1xf32>
    %cst_22 = arith.constant 2.000000e+00 : f32
    %60 = vector.broadcast %cst_22 : f32 to vector<8x1xf32>
    %61 = arith.subf %60, %59 : vector<8x1xf32>
    %62 = arith.mulf %58, %61 : vector<8x1xf32>
    %cst_23 = arith.constant dense<0.000000e+00> : vector<8x8xf32>
    %63 = tpu.matmul %55, %49, %cst_23 {dimension_numbers = #tpu.dot_dimension_numbers<[1], [0], [0], [1], [0, 0, 1, 1], [], []>} : vector<8x8xf32>, vector<8x8xf32>, vector<8x8xf32> -> vector<8x8xf32>
    %64 = vector.broadcast %62 : vector<8x1xf32> to vector<8x8xf32>
    %65 = arith.mulf %63, %64 : vector<8x8xf32>
    %c0_24 = arith.constant 0 : index
    %c16 = arith.constant 16 : index
    %66 = vector.load %arg7[%c0_24, %c16] : memref<8x32xf32, #tpu.memory_space<vmem>>, vector<8x8xf32>
    tpu.vector_store %arg7[%c0_24, %c16], %65 {strides = array<i32>} : memref<8x32xf32, #tpu.memory_space<vmem>>, vector<8x8xf32>,
    %67 = vector.extract_strided_slice %6 {offsets = [0, 24], sizes = [8, 8], strides = [1, 1]} : vector<8x96xf32> to vector<8x8xf32>
    %68 = vector.extract_strided_slice %6 {offsets = [0, 56], sizes = [8, 8], strides = [1, 1]} : vector<8x96xf32> to vector<8x8xf32>
    %69 = vector.extract_strided_slice %6 {offsets = [0, 88], sizes = [8, 8], strides = [1, 1]} : vector<8x96xf32> to vector<8x8xf32>
    %cst_25 = arith.constant dense<0.000000e+00> : vector<8x8xf32>
    %70 = tpu.matmul %67, %68, %cst_25 {dimension_numbers = #tpu.dot_dimension_numbers<[1], [1], [0], [0], [0, 0, 1, 0], [], []>} : vector<8x8xf32>, vector<8x8xf32>, vector<8x8xf32> -> vector<8x8xf32>
    %cst_26 = arith.constant dense<0xFF800000> : vector<8xf32>
    %71 = vector.multi_reduction <maximumf>, %70, %cst_26 [1] : vector<8x8xf32> to vector<8xf32>
    %72 = vector.shape_cast %71 : vector<8xf32> to vector<8x1xf32>
    %73 = vector.broadcast %72 : vector<8x1xf32> to vector<8x8xf32>
    %74 = arith.subf %70, %73 : vector<8x8xf32>
    %75 = math.exp %74 : vector<8x8xf32>
    %cst_27 = arith.constant dense<0.000000e+00> : vector<8xf32>
    %76 = vector.multi_reduction <add>, %75, %cst_27 [1] : vector<8x8xf32> to vector<8xf32>
    %77 = vector.shape_cast %76 : vector<8xf32> to vector<8x1xf32>
    %78 = tpu.reciprocal %77 {approx = true} : vector<8x1xf32> -> vector<8x1xf32>
    %79 = arith.mulf %77, %78 : vector<8x1xf32>
    %cst_28 = arith.constant 2.000000e+00 : f32
    %80 = vector.broadcast %cst_28 : f32 to vector<8x1xf32>
    %81 = arith.subf %80, %79 : vector<8x1xf32>
    %82 = arith.mulf %78, %81 : vector<8x1xf32>
    %cst_29 = arith.constant dense<0.000000e+00> : vector<8x8xf32>
    %83 = tpu.matmul %75, %69, %cst_29 {dimension_numbers = #tpu.dot_dimension_numbers<[1], [0], [0], [1], [0, 0, 1, 1], [], []>} : vector<8x8xf32>, vector<8x8xf32>, vector<8x8xf32> -> vector<8x8xf32>
    %84 = vector.broadcast %82 : vector<8x1xf32> to vector<8x8xf32>
    %85 = arith.mulf %83, %84 : vector<8x8xf32>
    %c0_30 = arith.constant 0 : index
    %c24 = arith.constant 24 : index
    %86 = vector.load %arg7[%c0_30, %c24] : memref<8x32xf32, #tpu.memory_space<vmem>>, vector<8x8xf32>
    tpu.vector_store %arg7[%c0_30, %c24], %85 {strides = array<i32>} : memref<8x32xf32, #tpu.memory_space<vmem>>, vector<8x8xf32>,
    %c0_31 = arith.constant 0 : index
    %c0_32 = arith.constant 0 : index
    %87 = vector.load %arg7[%c0_31, %c0_32] : memref<8x32xf32, #tpu.memory_space<vmem>>, vector<8x32xf32>
    %c0_33 = arith.constant 0 : index
    %c0_34 = arith.constant 0 : index
    %88 = vector.load %arg4[%c0_33, %c0_34] : memref<32x32xf32, #tpu.memory_space<vmem>>, vector<32x32xf32>
    %cst_35 = arith.constant dense<0.000000e+00> : vector<8x32xf32>
    %89 = tpu.matmul %87, %88, %cst_35 {dimension_numbers = #tpu.dot_dimension_numbers<[1], [0], [0], [1], [0, 0, 1, 1], [], []>} : vector<8x32xf32>, vector<32x32xf32>, vector<8x32xf32> -> vector<8x32xf32>
    %c0_36 = arith.constant 0 : index
    %c0_37 = arith.constant 0 : index
    %90 = vector.load %arg5[%c0_36, %c0_37] : memref<1x32xf32, #tpu.memory_space<vmem>>, vector<1x32xf32>
    %91 = vector.broadcast %90 : vector<1x32xf32> to vector<8x32xf32>
    %92 = arith.addf %89, %91 : vector<8x32xf32>
    %c0_38 = arith.constant 0 : index
    %c0_39 = arith.constant 0 : index
    %c0_40 = arith.constant 0 : index
    %93 = vector.load %arg6[%c0_38, %c0_39, %c0_40] : memref<1x8x32xf32, #tpu.memory_space<vmem>>, vector<1x8x32xf32>
    %94 = vector.shape_cast %93 : vector<1x8x32xf32> to vector<8x32xf32>
    %95 = vector.shape_cast %92 : vector<8x32xf32> to vector<1x8x32xf32>
    tpu.vector_store %arg6[%c0_38, %c0_39, %c0_40], %95 {strides = array<i32>} : memref<1x8x32xf32, #tpu.memory_space<vmem>>, vector<1x8x32xf32>,
    return
  }
  func.func @transform_0(%arg0: i32) -> (i32, i32, i32) {
    %c0_i32 = arith.constant 0 : i32
    %c0_i32_0 = arith.constant 0 : i32
    %c0_i32_1 = arith.constant 0 : i32
    return %arg0, %c0_i32, %c0_i32_0 : i32, i32, i32
  }
  func.func @transform_1(%arg0: i32) -> (i32, i32) {
    %c0_i32 = arith.constant 0 : i32
    %c0_i32_0 = arith.constant 0 : i32
    %c0_i32_1 = arith.constant 0 : i32
    return %c0_i32, %c0_i32_0 : i32, i32
  }
  func.func @transform_2(%arg0: i32) -> (i32, i32) {
    %c0_i32 = arith.constant 0 : i32
    %c0_i32_0 = arith.constant 0 : i32
    %c0_i32_1 = arith.constant 0 : i32
    return %c0_i32, %c0_i32_0 : i32, i32
  }
  func.func @transform_3(%arg0: i32) -> (i32, i32) {
    %c0_i32 = arith.constant 0 : i32
    %c0_i32_0 = arith.constant 0 : i32
    %c0_i32_1 = arith.constant 0 : i32
    return %c0_i32, %c0_i32_0 : i32, i32
  }
  func.func @transform_4(%arg0: i32) -> (i32, i32) {
    %c0_i32 = arith.constant 0 : i32
    %c0_i32_0 = arith.constant 0 : i32
    %c0_i32_1 = arith.constant 0 : i32
    return %c0_i32, %c0_i32_0 : i32, i32
  }
  func.func @transform_5(%arg0: i32) -> (i32, i32, i32) {
    %c0_i32 = arith.constant 0 : i32
    %c0_i32_0 = arith.constant 0 : i32
    %c0_i32_1 = arith.constant 0 : i32
    return %arg0, %c0_i32, %c0_i32_0 : i32, i32, i32
  }
}

</mosaic_0001>

<llo_original>
// kernel: tpu_custom_call.1
$region0: #{tpu_custom_call.1}
  #allocation0 [shape = 'u32[]', space=smem, size = 0x4, offset = 0x4, fixed_abs, tag = 'smem constant byte address 0x4 - core index']
  #allocation1 [shape = 'u32[144,128]{1,0:T(1,128)}', space=vmem, size = 0x12000, scoped, tag = 'internal scratch']
  #allocation2 [shape = 'f32[8,32]{1,0:T(8,128)}', space=vmem, size = 0x1000, scoped, tag = 'scratch operand']
  %s0 = inlined_call_operand.hbm [shape: f32[2,8,32], index: 0, kind: input, shape index: {}]
  %s1 = inlined_call_operand.hbm [shape: f32[32,96], index: 1, kind: input, shape index: {}]
  %s2 = inlined_call_operand.vmem [shape: f32[1,96], index: 2, kind: input, shape index: {}]
  %s3 = inlined_call_operand.hbm [shape: f32[32,32], index: 3, kind: input, shape index: {}]
  %s4 = inlined_call_operand.vmem [shape: f32[1,32], index: 4, kind: input, shape index: {}]
  %s5 = inlined_call_operand.hbm [shape: f32[2,8,32], index: 5, kind: output, shape index: {}]
  %s6 = sld [smem:[#allocation0]]
  $region65: #{tpu_custom_call.1} parent=0
    _
  %s8 = ssub.s32 1, %s6
  %s9 = scalar_select 0, %s8, %s6
  $region1: #{tpu_custom_call.1} parent=0
    #allocation3 [shape = 'u8[8192]{0}', space=vmem, size = 0x2000, scoped, tag = 'input window, operand 0']
    #allocation4 [shape = 's32[2]{0}', space=sflag, size = 0x8, scoped, tag = 'scoped memory for tpu_custom_call.1']
    #allocation5 [shape = 's32[2]{0}', space=sflag, size = 0x8, scoped, tag = 'scoped memory for tpu_custom_call.1']
    #allocation6 [shape = 'u8[16384]{0}', space=vmem, size = 0x4000, scoped, tag = 'input window, operand 1, single buffered']
    #allocation7 [shape = 's32[1]{0}', space=sflag, size = 0x4, scoped, tag = 'scoped memory for tpu_custom_call.1']
    #allocation8 [shape = 'u8[16384]{0}', space=vmem, size = 0x4000, scoped, tag = 'input window, operand 3, single buffered']
    #allocation9 [shape = 'u8[8192]{0}', space=vmem, size = 0x2000, scoped, tag = 'output window, operand 0']
    %10 = vsyncpa [#allocation4], 0
    %s11 = scalar_lea.sflag [#allocation4], 1
    %12 = vsyncpa %s11, 0
    %13 = vsyncpa [#allocation7], 0
    %14 = vsyncpa [#allocation5], 0
    %s15 = scalar_lea.sflag [#allocation5], 1
    %16 = vsyncpa %s15, 0
    loop: start=0, step=1, limit=4
    $region2: #{tpu_custom_call.1} parent=1 // loop_pre_header
      _
    $region3: #{tpu_custom_call.1} parent=1 // loop_header
      %s18 = sphi 0, %s22
      %p19 = scmp.ge.s32.totalorder %s18, 4
      %s28 = sphi 0, %s30
      %s31 = sphi 0, %s28
      %s32 = sphi 0, %s31
      %s48 = sphi 0, %s32
      %s52 = sphi 0, %s52
      %s54 = sphi 0, %s52
      %s55 = sphi 0, %s54
      %s69 = sphi 0, %s55
      %s73 = sphi 0, %s73
      %s75 = sphi 0, %s73
      %s76 = sphi 0, %s75
      %s90 = sphi 0, %s76
      %s94 = sphi 0, %s94
      %s96 = sphi 0, %s94
      %s97 = sphi 0, %s96
      %s111 = sphi 0, %s97
      %s115 = sphi 0, %s115
      %s117 = sphi 0, %s115
      %s118 = sphi 0, %s117
      %s132 = sphi 0, %s118
      %s138 = sphi 0, %s140
      %s141 = sphi 0, %s138
      %s142 = sphi 0, %s141
      %s158 = sphi 0, %s142
    $region4: #{tpu_custom_call.1} parent=1 // loop_header_branch
      %21 = sbr.rel (%p19) target = $region8
    $region5: #{tpu_custom_call.1} parent=1 // loop_body
      %s23 = ssub.s32 %s18, 1
      %s24 = ssub.s32 %s18, 2
      %s25 = sadd.s32 %s18, 1
      %s26 = ssub.s32 %s18, %s25
      %p27 = scmp.eq.s32.totalorder %s26, 0
      %s29 = sadd.s32 %s28, 1
      %s30 = scalar_select %p27, %s28, %s29
      %p33 = pneg %p27
      %p34 = scmp.eq.s32.totalorder %s18, 1
      %p35 = por %p33, %p34
      %p36 = scmp.ne.s32.totalorder %s28, %s31
      %p37 = scmp.eq.s32.totalorder %s18, 0
      %p38 = por %p36, %p37
      %p39 = scmp.ne.s32.totalorder %s28, %s31
      %p40 = scmp.eq.s32.totalorder %s23, 1
      %p41 = por %p39, %p40
      %p42 = scmp.ne.s32.totalorder %s31, %s32
      %p43 = scmp.eq.s32.totalorder %s23, 0
      %p44 = por %p42, %p43
      %p45 = scmp.ne.s32.totalorder %s31, %s32
      %p46 = scmp.eq.s32.totalorder %s24, 1
      %p47 = por %p45, %p46
      %p49 = scmp.ne.s32.totalorder %s32, %s48
      %p50 = scmp.eq.s32.totalorder %s24, 0
      %p51 = por %p49, %p50
      %s53 = sadd.s32 %s52, 1
      %p56 = scmp.eq.s32.totalorder %s18, 1
      %p57 = scmp.ne.s32.totalorder %s52, %s54
      %p58 = scmp.eq.s32.totalorder %s18, 0
      %p59 = por %p57, %p58
      %p60 = scmp.ne.s32.totalorder %s52, %s54
      %p61 = scmp.eq.s32.totalorder %s23, 1
      %p62 = por %p60, %p61
      %p63 = scmp.ne.s32.totalorder %s54, %s55
      %p64 = scmp.eq.s32.totalorder %s23, 0
      %p65 = por %p63, %p64
      %p66 = scmp.ne.s32.totalorder %s54, %s55
      %p67 = scmp.eq.s32.totalorder %s24, 1
      %p68 = por %p66, %p67
      %p70 = scmp.ne.s32.totalorder %s55, %s69
      %p71 = scmp.eq.s32.totalorder %s24, 0
      %p72 = por %p70, %p71
      %s74 = sadd.s32 %s73, 1
      %p77 = scmp.eq.s32.totalorder %s18, 1
      %p78 = scmp.ne.s32.totalorder %s73, %s75
      %p79 = scmp.eq.s32.totalorder %s18, 0
      %p80 = por %p78, %p79
      %p81 = scmp.ne.s32.totalorder %s73, %s75
      %p82 = scmp.eq.s32.totalorder %s23, 1
      %p83 = por %p81, %p82
      %p84 = scmp.ne.s32.totalorder %s75, %s76
      %p85 = scmp.eq.s32.totalorder %s23, 0
      %p86 = por %p84, %p85
      %p87 = scmp.ne.s32.totalorder %s75, %s76
      %p88 = scmp.eq.s32.totalorder %s24, 1
      %p89 = por %p87, %p88
      %p91 = scmp.ne.s32.totalorder %s76, %s90
      %p92 = scmp.eq.s32.totalorder %s24, 0
      %p93 = por %p91, %p92
      %s95 = sadd.s32 %s94, 1
      %p98 = scmp.eq.s32.totalorder %s18, 1
      %p99 = scmp.ne.s32.totalorder %s94, %s96
      %p100 = scmp.eq.s32.totalorder %s18, 0
      %p101 = por %p99, %p100
      %p102 = scmp.ne.s32.totalorder %s94, %s96
      %p103 = scmp.eq.s32.totalorder %s23, 1
      %p104 = por %p102, %p103
      %p105 = scmp.ne.s32.totalorder %s96, %s97
      %p106 = scmp.eq.s32.totalorder %s23, 0
      %p107 = por %p105, %p106
      %p108 = scmp.ne.s32.totalorder %s96, %s97
      %p109 = scmp.eq.s32.totalorder %s24, 1
      %p110 = por %p108, %p109
      %p112 = scmp.ne.s32.totalorder %s97, %s111
      %p113 = scmp.eq.s32.totalorder %s24, 0
      %p114 = por %p112, %p113
      %s116 = sadd.s32 %s115, 1
      %p119 = scmp.eq.s32.totalorder %s18, 1
      %p120 = scmp.ne.s32.totalorder %s115, %s117
      %p121 = scmp.eq.s32.totalorder %s18, 0
      %p122 = por %p120, %p121
      %p123 = scmp.ne.s32.totalorder %s115, %s117
      %p124 = scmp.eq.s32.totalorder %s23, 1
      %p125 = por %p123, %p124
      %p126 = scmp.ne.s32.totalorder %s117, %s118
      %p127 = scmp.eq.s32.totalorder %s23, 0
      %p128 = por %p126, %p127
      %p129 = scmp.ne.s32.totalorder %s117, %s118
      %p130 = scmp.eq.s32.totalorder %s24, 1
      %p131 = por %p129, %p130
      %p133 = scmp.ne.s32.totalorder %s118, %s132
      %p134 = scmp.eq.s32.totalorder %s24, 0
      %p135 = por %p133, %p134
      %s136 = ssub.s32 %s18, %s25
      %p137 = scmp.eq.s32.totalorder %s136, 0
      %s139 = sadd.s32 %s138, 1
      %s140 = scalar_select %p137, %s138, %s139
      %p143 = pneg %p137
      %p144 = scmp.eq.s32.totalorder %s18, 1
      %p145 = por %p143, %p144
      %p146 = scmp.ne.s32.totalorder %s138, %s141
      %p147 = scmp.eq.s32.totalorder %s18, 0
      %p148 = por %p146, %p147
      %p149 = scmp.ne.s32.totalorder %s138, %s141
      %p150 = scmp.eq.s32.totalorder %s23, 1
      %p151 = por %p149, %p150
      %p152 = scmp.ne.s32.totalorder %s141, %s142
      %p153 = scmp.eq.s32.totalorder %s23, 0
      %p154 = por %p152, %p153
      %p155 = scmp.ne.s32.totalorder %s141, %s142
      %p156 = scmp.eq.s32.totalorder %s24, 1
      %p157 = por %p155, %p156
      %p159 = scmp.ne.s32.totalorder %s142, %s158
      %p160 = scmp.eq.s32.totalorder %s24, 0
      %p161 = por %p159, %p160
      %p162 = scmp.le.s32.totalorder 1, %s18
      %p163 = scmp.lt.s32.totalorder %s18, 3
      %p164 = pnand %p162, %p163
      %p165 = pneg %p164
      // Predicated region
      $region9: #{tpu_custom_call.1} parent=5 // pred_check
        _
      $region10: #{tpu_custom_call.1} parent=5 // pred_check_branch
        %167 = sbr.rel (%p164) target = $region12
      $region11: #{tpu_custom_call.1} parent=5 // pred_region
        %s168 = ssub.s32 %s18, 1
        // Predicated region
        $region13: #{tpu_custom_call.1} parent=11 // pred_check
          %p169 = pneg %p65
        $region14: #{tpu_custom_call.1} parent=11 // pred_check_branch
          %171 = sbr.rel (%p169) target = $region16
        $region15: #{tpu_custom_call.1} parent=11 // pred_region
          %s173 = ssub.s32 512, 512
          %174 = vsyncadd [#allocation7], %s173
          %s175 = sshll.u32 [#allocation6], 4
          %s176 = int_to_ptr.vmem [resolvable:$true] %s175
          %181 = dma.hbm_to_vmem [thread:$0]  %s1, 512, %s176, [#allocation7], 128, 128, 8
        $region16: #{tpu_custom_call.1} parent=11 // pred_fallthru
          _
        // Predicated region
        $region17: #{tpu_custom_call.1} parent=11 // pred_check
          %p182 = pneg %p86
        $region18: #{tpu_custom_call.1} parent=11 // pred_check_branch
          %184 = sbr.rel (%p182) target = $region20
        $region19: #{tpu_custom_call.1} parent=11 // pred_region
          _
        $region20: #{tpu_custom_call.1} parent=11 // pred_fallthru
          _
        // Predicated region
        $region21: #{tpu_custom_call.1} parent=11 // pred_check
          %p185 = pneg %p107
        $region22: #{tpu_custom_call.1} parent=11 // pred_check_branch
          %187 = sbr.rel (%p185) target = $region24
        $region23: #{tpu_custom_call.1} parent=11 // pred_region
          %s189 = ssub.s32 512, 512
          %190 = vsyncadd [#allocation7], %s189
          %s191 = sshll.u32 [#allocation8], 4
          %s192 = int_to_ptr.vmem [resolvable:$true] %s191
          %197 = dma.hbm_to_vmem [thread:$0]  %s3, 512, %s192, [#allocation7], 128, 128, 8
        $region24: #{tpu_custom_call.1} parent=11 // pred_fallthru
          _
        // Predicated region
        $region25: #{tpu_custom_call.1} parent=11 // pred_check
          %p198 = pneg %p128
        $region26: #{tpu_custom_call.1} parent=11 // pred_check_branch
          %200 = sbr.rel (%p198) target = $region28
        $region27: #{tpu_custom_call.1} parent=11 // pred_region
          _
        $region28: #{tpu_custom_call.1} parent=11 // pred_fallthru
          _
      $region12: #{tpu_custom_call.1} parent=5 // pred_fallthru
        _
      %p201 = scmp.lt.s32.totalorder %s18, 2
      // Predicated region
      $region29: #{tpu_custom_call.1} parent=5 // pred_check
        %p202 = pneg %p201
      $region30: #{tpu_custom_call.1} parent=5 // pred_check_branch
        %204 = sbr.rel (%p202) target = $region32
      $region31: #{tpu_custom_call.1} parent=5 // pred_region
        // Predicated region
        $region33: #{tpu_custom_call.1} parent=31 // pred_check
          %p205 = pneg %p38
        $region34: #{tpu_custom_call.1} parent=31 // pred_check_branch
          %207 = sbr.rel (%p205) target = $region36
        $region35: #{tpu_custom_call.1} parent=31 // pred_region
          %s208 = sand.u32 %s28, 1
          %s209 = scalar_lea.sflag [#allocation4], %s208
          %s210 = sand.u32 %s28, 1
          %s211 = smul.addr %s210, 8
          %s212 = scalar_lea.vmem [#allocation3], %s211
          %s214 = ssub.s32 128, 128
          %215 = vsyncadd %s209, %s214
          %s216 = smul.addr %s18, 128
          %s217 = scalar_lea.hbm %s0, %s216
          %s219 = sshll.u32 %s212, 4
          %s220 = int_to_ptr.vmem [resolvable:$true] %s219
          %222 = dma.hbm_to_vmem [thread:$0]  %s217, 128, %s220, %s209
        $region36: #{tpu_custom_call.1} parent=31 // pred_fallthru
          _
      $region32: #{tpu_custom_call.1} parent=5 // pred_fallthru
        _
      %p223 = scmp.le.s32.totalorder 1, %s18
      %p224 = scmp.lt.s32.totalorder %s18, 3
      %p225 = pnand %p223, %p224
      %p226 = pneg %p225
      // Predicated region
      $region37: #{tpu_custom_call.1} parent=5 // pred_check
        _
      $region38: #{tpu_custom_call.1} parent=5 // pred_check_branch
        %228 = sbr.rel (%p225) target = $region40
      $region39: #{tpu_custom_call.1} parent=5 // pred_region
        %s229 = ssub.s32 %s18, 1
        %s230 = sand.u32 %s31, 1
        %s231 = scalar_lea.sflag [#allocation4], %s230
        %s232 = sand.u32 %s31, 1
        %s233 = smul.addr %s232, 8
        %s234 = scalar_lea.vmem [#allocation3], %s233
        // Predicated region
        $region41: #{tpu_custom_call.1} parent=39 // pred_check
          %p235 = pneg %p44
        $region42: #{tpu_custom_call.1} parent=39 // pred_check_branch
          %237 = sbr.rel (%p235) target = $region44
        $region43: #{tpu_custom_call.1} parent=39 // pred_region
          %238 = dma.done %s231, 128
        $region44: #{tpu_custom_call.1} parent=39 // pred_fallthru
          _
        // Predicated region
        $region45: #{tpu_custom_call.1} parent=39 // pred_check
          %p239 = pneg %p65
        $region46: #{tpu_custom_call.1} parent=39 // pred_check_branch
          %241 = sbr.rel (%p239) target = $region48
        $region47: #{tpu_custom_call.1} parent=39 // pred_region
          %242 = dma.done [#allocation7], 512
        $region48: #{tpu_custom_call.1} parent=39 // pred_fallthru
          _
        // Predicated region
        $region49: #{tpu_custom_call.1} parent=39 // pred_check
          %p243 = pneg %p107
        $region50: #{tpu_custom_call.1} parent=39 // pred_check_branch
          %245 = sbr.rel (%p243) target = $region52
        $region51: #{tpu_custom_call.1} parent=39 // pred_region
          %246 = dma.done [#allocation7], 512
        $region52: #{tpu_custom_call.1} parent=39 // pred_fallthru
          _
        %s247 = sand.u32 %s31, 1
        %s248 = scalar_lea.sflag [#allocation4], %s247
        %s249 = sand.u32 %s31, 1
        %s250 = smul.addr %s249, 8
        %s251 = scalar_lea.vmem [#allocation3], %s250
        %p252 = pneg %p44
        %p253 = pneg %p41
        %p254 = pneg %p65
        %p255 = pneg %p62
        %p256 = pneg %p86
        %p257 = pneg %p83
        %p258 = pneg %p107
        %p259 = pneg %p104
        %p260 = pneg %p128
        %p261 = pneg %p125
        %p262 = pneg %p154
        %p263 = pneg %p151
        %s264 = sand.u32 %s141, 1
        %s265 = scalar_lea.sflag [#allocation5], %s264
        %s266 = sand.u32 %s141, 1
        %s267 = smul.addr %s266, 8
        %s268 = scalar_lea.vmem [#allocation9], %s267
        %v269 = vld [vmem:[%s234] sm:$0xff]
        %v270 = vld [vmem:[#allocation6] sm:$0xff]
        %v271 = vld [vmem:[#allocation6 + $0x8] sm:$0xff]
        %v272 = vld [vmem:[#allocation6 + $0x10] sm:$0xff]
        %v273 = vld [vmem:[#allocation6 + $0x18] sm:$0xff]
        %v274 = vld [vmem:[%s2] sm:$0x1]
        %v276 = vlaneseq
        %v277 = vshrl.u32 %v276, 7
        %v278 = vsub.s32 0, %v277
        %v279 = vrot.slane %v274, %v278
        %vm281 = vcmask 261120
        %v283 = vsel %vm281, %v269, 0
        %285 = vmatprep.subr.mxu0 0.0
        %286 = vmatpush1.msra.mxu0 0.0
        %287 = vmatprep.subr.mxu0 0.0
        %288 = vmatpush1.msra.mxu0 0.0
        %289 = vmatprep.subr.mxu0 0.0
        %290 = vmatpush1.msra.mxu0 0.0
        %291 = vmatprep.subr.mxu0 0.0
        %292 = vmatpush1.msra.mxu0 0.0
        %293 = vmatprep.subr.mxu0 0.0
        %294 = vmatpush1.msra.mxu0 0.0
        %295 = vmatprep.subr.mxu0 0.0
        %296 = vmatpush1.msra.mxu0 0.0
        %297 = vmatprep.subr.mxu0 0.0
        %298 = vmatpush1.msra.mxu0 0.0
        %299 = vmatprep.subr.mxu0 0.0
        %300 = vmatpush1.msra.mxu0 0.0
        %301 = vmatprep.subr.mxu0 0.0
        %302 = vmatpush1.msra.mxu0 0.0
        %303 = vmatprep.subr.mxu0 0.0
        %304 = vmatpush1.msra.mxu0 0.0
        %305 = vmatprep.subr.mxu0 0.0
        %306 = vmatpush1.msra.mxu0 0.0
        %307 = vmatprep.subr.mxu0 0.0
        %308 = vmatpush1.msra.mxu0 0.0
        %309 = vmatprep.subr.mxu0 0.0
        %310 = vmatpush1.msra.mxu0 %v273
        %311 = vmatprep.subr.mxu0 0.0
        %312 = vmatpush1.msra.mxu0 %v272
        %313 = vmatprep.subr.mxu0 0.0
        %314 = vmatpush1.msra.mxu0 %v271
        %315 = vmatprep.subr.mxu0 0.0
        %316 = vmatpush1.msra.mxu0 %v270
        %317 = vmatprep.subr.mxu0 0.0
        %318 = vmatpush2.msra.mxu0 0.0
        %319 = vmatprep.subr.mxu0 0.0
        %320 = vmatpush2.msra.mxu0 0.0
        %321 = vmatprep.subr.mxu0 0.0
        %322 = vmatpush2.msra.mxu0 0.0
        %323 = vmatprep.subr.mxu0 0.0
        %324 = vmatpush2.msra.mxu0 0.0
        %325 = vmatprep.subr.mxu0 0.0
        %326 = vmatpush2.msra.mxu0 0.0
        %327 = vmatprep.subr.mxu0 0.0
        %328 = vmatpush2.msra.mxu0 0.0
        %329 = vmatprep.subr.mxu0 0.0
        %330 = vmatpush2.msra.mxu0 0.0
        %331 = vmatprep.subr.mxu0 0.0
        %332 = vmatpush2.msra.mxu0 0.0
        %333 = vmatprep.subr.mxu0 0.0
        %334 = vmatpush2.msra.mxu0 0.0
        %335 = vmatprep.subr.mxu0 0.0
        %336 = vmatpush2.msra.mxu0 0.0
        %337 = vmatprep.subr.mxu0 0.0
        %338 = vmatpush2.msra.mxu0 0.0
        %339 = vmatprep.subr.mxu0 0.0
        %340 = vmatpush2.msra.mxu0 0.0
        %341 = vmatprep.subr.mxu0 0.0
        %342 = vmatpush2.msra.mxu0 0.0
        %343 = vmatprep.subr.mxu0 0.0
        %344 = vmatpush2.msra.mxu0 0.0
        %345 = vmatprep.subr.mxu0 0.0
        %346 = vmatpush2.msra.mxu0 0.0
        %347 = vmatprep.subr.mxu0 0.0
        %348 = vmatpush2.msra.mxu0 0.0
        %349 = vmatprep.mubr.f32.mxu0 0.0
        %350 = vmatmul.mubr.f32.gmra.mxu0 %v283
        %v351 = vpop.f32.mrf.mxu0
        %v352 = vadd.f32 %v279, %v351
        %v353 = vpop.f32.mrf.mxu0
        %354 = vdwg.mxu0
        %356 = vrot.lane.b32.xlu0 %v352, 96
        %v357 = vpop.permute.xlu0 %356
        %vm358 = vcmask 64512
        %v359 = vsel %vm358, %v352, 0
        %v361 = vsel %vm358, %v357, 0
        %363 = vmatprep.subr.mxu0 0.0
        %364 = vmatpush1.xpose.msra.mxu0 0.0
        %365 = vmatprep.subr.mxu0 0.0
        %366 = vmatpush1.xpose.msra.mxu0 0.0
        %367 = vmatprep.subr.mxu0 0.0
        %368 = vmatpush1.xpose.msra.mxu0 0.0
        %369 = vmatprep.subr.mxu0 0.0
        %370 = vmatpush1.xpose.msra.mxu0 0.0
        %371 = vmatprep.subr.mxu0 0.0
        %372 = vmatpush1.xpose.msra.mxu0 0.0
        %373 = vmatprep.subr.mxu0 0.0
        %374 = vmatpush1.xpose.msra.mxu0 0.0
        %375 = vmatprep.subr.mxu0 0.0
        %376 = vmatpush1.xpose.msra.mxu0 0.0
        %377 = vmatprep.subr.mxu0 0.0
        %378 = vmatpush1.xpose.msra.mxu0 0.0
        %379 = vmatprep.subr.mxu0 0.0
        %380 = vmatpush1.xpose.msra.mxu0 0.0
        %381 = vmatprep.subr.mxu0 0.0
        %382 = vmatpush1.xpose.msra.mxu0 0.0
        %383 = vmatprep.subr.mxu0 0.0
        %384 = vmatpush1.xpose.msra.mxu0 0.0
        %385 = vmatprep.subr.mxu0 0.0
        %386 = vmatpush1.xpose.msra.mxu0 0.0
        %387 = vmatprep.subr.mxu0 0.0
        %388 = vmatpush1.xpose.msra.mxu0 0.0
        %389 = vmatprep.subr.mxu0 0.0
        %390 = vmatpush1.xpose.msra.mxu0 0.0
        %391 = vmatprep.subr.mxu0 0.0
        %392 = vmatpush1.xpose.msra.mxu0 0.0
        %393 = vmatprep.subr.mxu0 0.0
        %394 = vmatpush1.xpose.msra.mxu0 %v361
        %395 = vmatprep.subr.mxu0 0.0
        %396 = vmatpush2.xpose.msra.mxu0 0.0
        %397 = vmatprep.subr.mxu0 0.0
        %398 = vmatpush2.xpose.msra.mxu0 0.0
        %399 = vmatprep.subr.mxu0 0.0
        %400 = vmatpush2.xpose.msra.mxu0 0.0
        %401 = vmatprep.subr.mxu0 0.0
        %402 = vmatpush2.xpose.msra.mxu0 0.0
        %403 = vmatprep.subr.mxu0 0.0
        %404 = vmatpush2.xpose.msra.mxu0 0.0
        %405 = vmatprep.subr.mxu0 0.0
        %406 = vmatpush2.xpose.msra.mxu0 0.0
        %407 = vmatprep.subr.mxu0 0.0
        %408 = vmatpush2.xpose.msra.mxu0 0.0
        %409 = vmatprep.subr.mxu0 0.0
        %410 = vmatpush2.xpose.msra.mxu0 0.0
        %411 = vmatprep.subr.mxu0 0.0
        %412 = vmatpush2.xpose.msra.mxu0 0.0
        %413 = vmatprep.subr.mxu0 0.0
        %414 = vmatpush2.xpose.msra.mxu0 0.0
        %415 = vmatprep.subr.mxu0 0.0
        %416 = vmatpush2.xpose.msra.mxu0 0.0
        %417 = vmatprep.subr.mxu0 0.0
        %418 = vmatpush2.xpose.msra.mxu0 0.0
        %419 = vmatprep.subr.mxu0 0.0
        %420 = vmatpush2.xpose.msra.mxu0 0.0
        %421 = vmatprep.subr.mxu0 0.0
        %422 = vmatpush2.xpose.msra.mxu0 0.0
        %423 = vmatprep.subr.mxu0 0.0
        %424 = vmatpush2.xpose.msra.mxu0 0.0
        %425 = vmatprep.subr.mxu0 0.0
        %426 = vmatpush2.xpose.msra.mxu0 0.0
        %427 = vmatprep.mubr.f32.mxu0 0.0
        %428 = vmatmul.mubr.f32.gmra.mxu0 %v359
        %v429 = vpop.f32.mrf.mxu0
        %v430 = vadd.f32 0.0, %v429
        %v431 = vpop.f32.mrf.mxu0
        %432 = vdwg.mxu0
        %v433 = vsel %vm358, %v430, -inf
        %434 = vmax.xlane.f32.xlu0 %v433
        %v435 = vpop.xlane.xlu0 %434
        %v436 = vsub.f32 %v430, %v435
        %v437 = vmul.f32 %v436, 1.442695
        %v438 = vpow.pop %v437
        %v439 = vsel %vm358, %v438, 0.0
        %440 = vadd.xlane.f32.xlu0 %v439
        %v441 = vpop.xlane.xlu0 %440
        %v442 = vrcp.pop %v441
        %v443 = vmul.f32 %v441, %v442
        %v444 = vsub.f32 2.0, %v443
        %v445 = vmul.f32 %v442, %v444
        %446 = vrot.lane.b32.xlu0 %v352, 64
        %v447 = vpop.permute.xlu0 %446
        %v450 = vsel %vm358, %v438, 0
        %452 = vmatprep.subr.mxu0 0.0
        %453 = vmatpush1.msra.mxu0 0.0
        %454 = vmatprep.subr.mxu0 0.0
        %455 = vmatpush1.msra.mxu0 0.0
        %456 = vmatprep.subr.mxu0 0.0
        %457 = vmatpush1.msra.mxu0 0.0
        %458 = vmatprep.subr.mxu0 0.0
        %459 = vmatpush1.msra.mxu0 0.0
        %460 = vmatprep.subr.mxu0 0.0
        %461 = vmatpush1.msra.mxu0 0.0
        %462 = vmatprep.subr.mxu0 0.0
        %463 = vmatpush1.msra.mxu0 0.0
        %464 = vmatprep.subr.mxu0 0.0
        %465 = vmatpush1.msra.mxu0 0.0
        %466 = vmatprep.subr.mxu0 0.0
        %467 = vmatpush1.msra.mxu0 0.0
        %468 = vmatprep.subr.mxu0 0.0
        %469 = vmatpush1.msra.mxu0 0.0
        %470 = vmatprep.subr.mxu0 0.0
        %471 = vmatpush1.msra.mxu0 0.0
        %472 = vmatprep.subr.mxu0 0.0
        %473 = vmatpush1.msra.mxu0 0.0
        %474 = vmatprep.subr.mxu0 0.0
        %475 = vmatpush1.msra.mxu0 0.0
        %476 = vmatprep.subr.mxu0 0.0
        %477 = vmatpush1.msra.mxu0 0.0
        %478 = vmatprep.subr.mxu0 0.0
        %479 = vmatpush1.msra.mxu0 0.0
        %480 = vmatprep.subr.mxu0 0.0
        %481 = vmatpush1.msra.mxu0 0.0
        %482 = vmatprep.subr.mxu0 0.0
        %483 = vmatpush1.msra.mxu0 %v447
        %484 = vmatprep.subr.mxu0 0.0
        %485 = vmatpush2.msra.mxu0 0.0
        %486 = vmatprep.subr.mxu0 0.0
        %487 = vmatpush2.msra.mxu0 0.0
        %488 = vmatprep.subr.mxu0 0.0
        %489 = vmatpush2.msra.mxu0 0.0
        %490 = vmatprep.subr.mxu0 0.0
        %491 = vmatpush2.msra.mxu0 0.0
        %492 = vmatprep.subr.mxu0 0.0
        %493 = vmatpush2.msra.mxu0 0.0
        %494 = vmatprep.subr.mxu0 0.0
        %495 = vmatpush2.msra.mxu0 0.0
        %496 = vmatprep.subr.mxu0 0.0
        %497 = vmatpush2.msra.mxu0 0.0
        %498 = vmatprep.subr.mxu0 0.0
        %499 = vmatpush2.msra.mxu0 0.0
        %500 = vmatprep.subr.mxu0 0.0
        %501 = vmatpush2.msra.mxu0 0.0
        %502 = vmatprep.subr.mxu0 0.0
        %503 = vmatpush2.msra.mxu0 0.0
        %504 = vmatprep.subr.mxu0 0.0
        %505 = vmatpush2.msra.mxu0 0.0
        %506 = vmatprep.subr.mxu0 0.0
        %507 = vmatpush2.msra.mxu0 0.0
        %508 = vmatprep.subr.mxu0 0.0
        %509 = vmatpush2.msra.mxu0 0.0
        %510 = vmatprep.subr.mxu0 0.0
        %511 = vmatpush2.msra.mxu0 0.0
        %512 = vmatprep.subr.mxu0 0.0
        %513 = vmatpush2.msra.mxu0 0.0
        %514 = vmatprep.subr.mxu0 0.0
        %515 = vmatpush2.msra.mxu0 0.0
        %516 = vmatprep.mubr.f32.mxu0 0.0
        %517 = vmatmul.mubr.f32.gmra.mxu0 %v450
        %v518 = vpop.f32.mrf.mxu0
        %v519 = vadd.f32 0.0, %v518
        %v520 = vpop.f32.mrf.mxu0
        %521 = vdwg.mxu0
        %v522 = vmul.f32 %v519, %v445
        %523 = vst.msk [vmem:[#allocation2] sm:$0xff] %vm358, %v522
        %524 = vrot.lane.b32.xlu0 %v352, 120
        %v525 = vpop.permute.xlu0 %524
        %526 = vrot.lane.b32.xlu0 %v352, 88
        %v527 = vpop.permute.xlu0 %526
        %v528 = vsel %vm358, %v525, 0
        %v530 = vsel %vm358, %v527, 0
        %532 = vmatprep.subr.mxu0 0.0
        %533 = vmatpush1.xpose.msra.mxu0 0.0
        %534 = vmatprep.subr.mxu0 0.0
        %535 = vmatpush1.xpose.msra.mxu0 0.0
        %536 = vmatprep.subr.mxu0 0.0
        %537 = vmatpush1.xpose.msra.mxu0 0.0
        %538 = vmatprep.subr.mxu0 0.0
        %539 = vmatpush1.xpose.msra.mxu0 0.0
        %540 = vmatprep.subr.mxu0 0.0
        %541 = vmatpush1.xpose.msra.mxu0 0.0
        %542 = vmatprep.subr.mxu0 0.0
        %543 = vmatpush1.xpose.msra.mxu0 0.0
        %544 = vmatprep.subr.mxu0 0.0
        %545 = vmatpush1.xpose.msra.mxu0 0.0
        %546 = vmatprep.subr.mxu0 0.0
        %547 = vmatpush1.xpose.msra.mxu0 0.0
        %548 = vmatprep.subr.mxu0 0.0
        %549 = vmatpush1.xpose.msra.mxu0 0.0
        %550 = vmatprep.subr.mxu0 0.0
        %551 = vmatpush1.xpose.msra.mxu0 0.0
        %552 = vmatprep.subr.mxu0 0.0
        %553 = vmatpush1.xpose.msra.mxu0 0.0
        %554 = vmatprep.subr.mxu0 0.0
        %555 = vmatpush1.xpose.msra.mxu0 0.0
        %556 = vmatprep.subr.mxu0 0.0
        %557 = vmatpush1.xpose.msra.mxu0 0.0
        %558 = vmatprep.subr.mxu0 0.0
        %559 = vmatpush1.xpose.msra.mxu0 0.0
        %560 = vmatprep.subr.mxu0 0.0
        %561 = vmatpush1.xpose.msra.mxu0 0.0
        %562 = vmatprep.subr.mxu0 0.0
        %563 = vmatpush1.xpose.msra.mxu0 %v530
        %564 = vmatprep.subr.mxu0 0.0
        %565 = vmatpush2.xpose.msra.mxu0 0.0
        %566 = vmatprep.subr.mxu0 0.0
        %567 = vmatpush2.xpose.msra.mxu0 0.0
        %568 = vmatprep.subr.mxu0 0.0
        %569 = vmatpush2.xpose.msra.mxu0 0.0
        %570 = vmatprep.subr.mxu0 0.0
        %571 = vmatpush2.xpose.msra.mxu0 0.0
        %572 = vmatprep.subr.mxu0 0.0
        %573 = vmatpush2.xpose.msra.mxu0 0.0
        %574 = vmatprep.subr.mxu0 0.0
        %575 = vmatpush2.xpose.msra.mxu0 0.0
        %576 = vmatprep.subr.mxu0 0.0
        %577 = vmatpush2.xpose.msra.mxu0 0.0
        %578 = vmatprep.subr.mxu0 0.0
        %579 = vmatpush2.xpose.msra.mxu0 0.0
        %580 = vmatprep.subr.mxu0 0.0
        %581 = vmatpush2.xpose.msra.mxu0 0.0
        %582 = vmatprep.subr.mxu0 0.0
        %583 = vmatpush2.xpose.msra.mxu0 0.0
        %584 = vmatprep.subr.mxu0 0.0
        %585 = vmatpush2.xpose.msra.mxu0 0.0
        %586 = vmatprep.subr.mxu0 0.0
        %587 = vmatpush2.xpose.msra.mxu0 0.0
        %588 = vmatprep.subr.mxu0 0.0
        %589 = vmatpush2.xpose.msra.mxu0 0.0
        %590 = vmatprep.subr.mxu0 0.0
        %591 = vmatpush2.xpose.msra.mxu0 0.0
        %592 = vmatprep.subr.mxu0 0.0
        %593 = vmatpush2.xpose.msra.mxu0 0.0
        %594 = vmatprep.subr.mxu0 0.0
        %595 = vmatpush2.xpose.msra.mxu0 0.0
        %596 = vmatprep.mubr.f32.mxu0 0.0
        %597 = vmatmul.mubr.f32.gmra.mxu0 %v528
        %v598 = vpop.f32.mrf.mxu0
        %v599 = vadd.f32 0.0, %v598
        %v600 = vpop.f32.mrf.mxu0
        %601 = vdwg.mxu0
        %v602 = vsel %vm358, %v599, -inf
        %603 = vmax.xlane.f32.xlu0 %v602
        %v604 = vpop.xlane.xlu0 %603
        %v605 = vsub.f32 %v599, %v604
        %v606 = vmul.f32 %v605, 1.442695
        %v607 = vpow.pop %v606
        %v608 = vsel %vm358, %v607, 0.0
        %609 = vadd.xlane.f32.xlu0 %v608
        %v610 = vpop.xlane.xlu0 %609
        %v611 = vrcp.pop %v610
        %v612 = vmul.f32 %v610, %v611
        %v613 = vsub.f32 2.0, %v612
        %v614 = vmul.f32 %v611, %v613
        %615 = vrot.lane.b32.xlu0 %v352, 56
        %v616 = vpop.permute.xlu0 %615
        %v619 = vsel %vm358, %v607, 0
        %621 = vmatprep.subr.mxu0 0.0
        %622 = vmatpush1.msra.mxu0 0.0
        %623 = vmatprep.subr.mxu0 0.0
        %624 = vmatpush1.msra.mxu0 0.0
        %625 = vmatprep.subr.mxu0 0.0
        %626 = vmatpush1.msra.mxu0 0.0
        %627 = vmatprep.subr.mxu0 0.0
        %628 = vmatpush1.msra.mxu0 0.0
        %629 = vmatprep.subr.mxu0 0.0
        %630 = vmatpush1.msra.mxu0 0.0
        %631 = vmatprep.subr.mxu0 0.0
        %632 = vmatpush1.msra.mxu0 0.0
        %633 = vmatprep.subr.mxu0 0.0
        %634 = vmatpush1.msra.mxu0 0.0
        %635 = vmatprep.subr.mxu0 0.0
        %636 = vmatpush1.msra.mxu0 0.0
        %637 = vmatprep.subr.mxu0 0.0
        %638 = vmatpush1.msra.mxu0 0.0
        %639 = vmatprep.subr.mxu0 0.0
        %640 = vmatpush1.msra.mxu0 0.0
        %641 = vmatprep.subr.mxu0 0.0
        %642 = vmatpush1.msra.mxu0 0.0
        %643 = vmatprep.subr.mxu0 0.0
        %644 = vmatpush1.msra.mxu0 0.0
        %645 = vmatprep.subr.mxu0 0.0
        %646 = vmatpush1.msra.mxu0 0.0
        %647 = vmatprep.subr.mxu0 0.0
        %648 = vmatpush1.msra.mxu0 0.0
        %649 = vmatprep.subr.mxu0 0.0
        %650 = vmatpush1.msra.mxu0 0.0
        %651 = vmatprep.subr.mxu0 0.0
        %652 = vmatpush1.msra.mxu0 %v616
        %653 = vmatprep.subr.mxu0 0.0
        %654 = vmatpush2.msra.mxu0 0.0
        %655 = vmatprep.subr.mxu0 0.0
        %656 = vmatpush2.msra.mxu0 0.0
        %657 = vmatprep.subr.mxu0 0.0
        %658 = vmatpush2.msra.mxu0 0.0
        %659 = vmatprep.subr.mxu0 0.0
        %660 = vmatpush2.msra.mxu0 0.0
        %661 = vmatprep.subr.mxu0 0.0
        %662 = vmatpush2.msra.mxu0 0.0
        %663 = vmatprep.subr.mxu0 0.0
        %664 = vmatpush2.msra.mxu0 0.0
        %665 = vmatprep.subr.mxu0 0.0
        %666 = vmatpush2.msra.mxu0 0.0
        %667 = vmatprep.subr.mxu0 0.0
        %668 = vmatpush2.msra.mxu0 0.0
        %669 = vmatprep.subr.mxu0 0.0
        %670 = vmatpush2.msra.mxu0 0.0
        %671 = vmatprep.subr.mxu0 0.0
        %672 = vmatpush2.msra.mxu0 0.0
        %673 = vmatprep.subr.mxu0 0.0
        %674 = vmatpush2.msra.mxu0 0.0
        %675 = vmatprep.subr.mxu0 0.0
        %676 = vmatpush2.msra.mxu0 0.0
        %677 = vmatprep.subr.mxu0 0.0
        %678 = vmatpush2.msra.mxu0 0.0
        %679 = vmatprep.subr.mxu0 0.0
        %680 = vmatpush2.msra.mxu0 0.0
        %681 = vmatprep.subr.mxu0 0.0
        %682 = vmatpush2.msra.mxu0 0.0
        %683 = vmatprep.subr.mxu0 0.0
        %684 = vmatpush2.msra.mxu0 0.0
        %685 = vmatprep.mubr.f32.mxu0 0.0
        %686 = vmatmul.mubr.f32.gmra.mxu0 %v619
        %v687 = vpop.f32.mrf.mxu0
        %v688 = vadd.f32 0.0, %v687
        %v689 = vpop.f32.mrf.mxu0
        %690 = vdwg.mxu0
        %v691 = vmul.f32 %v688, %v614
        %693 = vrot.lane.b32.xlu0 %v691, 8
        %v694 = vpop.permute.xlu0 %693
        %vm696 = vcmask 130112
        %697 = vst.msk [vmem:[#allocation2] sm:$0xff] %vm696, %v694
        %698 = vrot.lane.b32.xlu0 %v352, 112
        %v699 = vpop.permute.xlu0 %698
        %700 = vrot.lane.b32.xlu0 %v352, 80
        %v701 = vpop.permute.xlu0 %700
        %v702 = vsel %vm358, %v699, 0
        %v704 = vsel %vm358, %v701, 0
        %706 = vmatprep.subr.mxu0 0.0
        %707 = vmatpush1.xpose.msra.mxu0 0.0
        %708 = vmatprep.subr.mxu0 0.0
        %709 = vmatpush1.xpose.msra.mxu0 0.0
        %710 = vmatprep.subr.mxu0 0.0
        %711 = vmatpush1.xpose.msra.mxu0 0.0
        %712 = vmatprep.subr.mxu0 0.0
        %713 = vmatpush1.xpose.msra.mxu0 0.0
        %714 = vmatprep.subr.mxu0 0.0
        %715 = vmatpush1.xpose.msra.mxu0 0.0
        %716 = vmatprep.subr.mxu0 0.0
        %717 = vmatpush1.xpose.msra.mxu0 0.0
        %718 = vmatprep.subr.mxu0 0.0
        %719 = vmatpush1.xpose.msra.mxu0 0.0
        %720 = vmatprep.subr.mxu0 0.0
        %721 = vmatpush1.xpose.msra.mxu0 0.0
        %722 = vmatprep.subr.mxu0 0.0
        %723 = vmatpush1.xpose.msra.mxu0 0.0
        %724 = vmatprep.subr.mxu0 0.0
        %725 = vmatpush1.xpose.msra.mxu0 0.0
        %726 = vmatprep.subr.mxu0 0.0
        %727 = vmatpush1.xpose.msra.mxu0 0.0
        %728 = vmatprep.subr.mxu0 0.0
        %729 = vmatpush1.xpose.msra.mxu0 0.0
        %730 = vmatprep.subr.mxu0 0.0
        %731 = vmatpush1.xpose.msra.mxu0 0.0
        %732 = vmatprep.subr.mxu0 0.0
        %733 = vmatpush1.xpose.msra.mxu0 0.0
        %734 = vmatprep.subr.mxu0 0.0
        %735 = vmatpush1.xpose.msra.mxu0 0.0
        %736 = vmatprep.subr.mxu0 0.0
        %737 = vmatpush1.xpose.msra.mxu0 %v704
        %738 = vmatprep.subr.mxu0 0.0
        %739 = vmatpush2.xpose.msra.mxu0 0.0
        %740 = vmatprep.subr.mxu0 0.0
        %741 = vmatpush2.xpose.msra.mxu0 0.0
        %742 = vmatprep.subr.mxu0 0.0
        %743 = vmatpush2.xpose.msra.mxu0 0.0
        %744 = vmatprep.subr.mxu0 0.0
        %745 = vmatpush2.xpose.msra.mxu0 0.0
        %746 = vmatprep.subr.mxu0 0.0
        %747 = vmatpush2.xpose.msra.mxu0 0.0
        %748 = vmatprep.subr.mxu0 0.0
        %749 = vmatpush2.xpose.msra.mxu0 0.0
        %750 = vmatprep.subr.mxu0 0.0
        %751 = vmatpush2.xpose.msra.mxu0 0.0
        %752 = vmatprep.subr.mxu0 0.0
        %753 = vmatpush2.xpose.msra.mxu0 0.0
        %754 = vmatprep.subr.mxu0 0.0
        %755 = vmatpush2.xpose.msra.mxu0 0.0
        %756 = vmatprep.subr.mxu0 0.0
        %757 = vmatpush2.xpose.msra.mxu0 0.0
        %758 = vmatprep.subr.mxu0 0.0
        %759 = vmatpush2.xpose.msra.mxu0 0.0
        %760 = vmatprep.subr.mxu0 0.0
        %761 = vmatpush2.xpose.msra.mxu0 0.0
        %762 = vmatprep.subr.mxu0 0.0
        %763 = vmatpush2.xpose.msra.mxu0 0.0
        %764 = vmatprep.subr.mxu0 0.0
        %765 = vmatpush2.xpose.msra.mxu0 0.0
        %766 = vmatprep.subr.mxu0 0.0
        %767 = vmatpush2.xpose.msra.mxu0 0.0
        %768 = vmatprep.subr.mxu0 0.0
        %769 = vmatpush2.xpose.msra.mxu0 0.0
        %770 = vmatprep.mubr.f32.mxu0 0.0
        %771 = vmatmul.mubr.f32.gmra.mxu0 %v702
        %v772 = vpop.f32.mrf.mxu0
        %v773 = vadd.f32 0.0, %v772
        %v774 = vpop.f32.mrf.mxu0
        %775 = vdwg.mxu0
        %v776 = vsel %vm358, %v773, -inf
        %777 = vmax.xlane.f32.xlu0 %v776
        %v778 = vpop.xlane.xlu0 %777
        %v779 = vsub.f32 %v773, %v778
        %v780 = vmul.f32 %v779, 1.442695
        %v781 = vpow.pop %v780
        %v782 = vsel %vm358, %v781, 0.0
        %783 = vadd.xlane.f32.xlu0 %v782
        %v784 = vpop.xlane.xlu0 %783
        %v785 = vrcp.pop %v784
        %v786 = vmul.f32 %v784, %v785
        %v787 = vsub.f32 2.0, %v786
        %v788 = vmul.f32 %v785, %v787
        %789 = vrot.lane.b32.xlu0 %v352, 48
        %v790 = vpop.permute.xlu0 %789
        %v793 = vsel %vm358, %v781, 0
        %795 = vmatprep.subr.mxu0 0.0
        %796 = vmatpush1.msra.mxu0 0.0
        %797 = vmatprep.subr.mxu0 0.0
        %798 = vmatpush1.msra.mxu0 0.0
        %799 = vmatprep.subr.mxu0 0.0
        %800 = vmatpush1.msra.mxu0 0.0
        %801 = vmatprep.subr.mxu0 0.0
        %802 = vmatpush1.msra.mxu0 0.0
        %803 = vmatprep.subr.mxu0 0.0
        %804 = vmatpush1.msra.mxu0 0.0
        %805 = vmatprep.subr.mxu0 0.0
        %806 = vmatpush1.msra.mxu0 0.0
        %807 = vmatprep.subr.mxu0 0.0
        %808 = vmatpush1.msra.mxu0 0.0
        %809 = vmatprep.subr.mxu0 0.0
        %810 = vmatpush1.msra.mxu0 0.0
        %811 = vmatprep.subr.mxu0 0.0
        %812 = vmatpush1.msra.mxu0 0.0
        %813 = vmatprep.subr.mxu0 0.0
        %814 = vmatpush1.msra.mxu0 0.0
        %815 = vmatprep.subr.mxu0 0.0
        %816 = vmatpush1.msra.mxu0 0.0
        %817 = vmatprep.subr.mxu0 0.0
        %818 = vmatpush1.msra.mxu0 0.0
        %819 = vmatprep.subr.mxu0 0.0
        %820 = vmatpush1.msra.mxu0 0.0
        %821 = vmatprep.subr.mxu0 0.0
        %822 = vmatpush1.msra.mxu0 0.0
        %823 = vmatprep.subr.mxu0 0.0
        %824 = vmatpush1.msra.mxu0 0.0
        %825 = vmatprep.subr.mxu0 0.0
        %826 = vmatpush1.msra.mxu0 %v790
        %827 = vmatprep.subr.mxu0 0.0
        %828 = vmatpush2.msra.mxu0 0.0
        %829 = vmatprep.subr.mxu0 0.0
        %830 = vmatpush2.msra.mxu0 0.0
        %831 = vmatprep.subr.mxu0 0.0
        %832 = vmatpush2.msra.mxu0 0.0
        %833 = vmatprep.subr.mxu0 0.0
        %834 = vmatpush2.msra.mxu0 0.0
        %835 = vmatprep.subr.mxu0 0.0
        %836 = vmatpush2.msra.mxu0 0.0
        %837 = vmatprep.subr.mxu0 0.0
        %838 = vmatpush2.msra.mxu0 0.0
        %839 = vmatprep.subr.mxu0 0.0
        %840 = vmatpush2.msra.mxu0 0.0
        %841 = vmatprep.subr.mxu0 0.0
        %842 = vmatpush2.msra.mxu0 0.0
        %843 = vmatprep.subr.mxu0 0.0
        %844 = vmatpush2.msra.mxu0 0.0
        %845 = vmatprep.subr.mxu0 0.0
        %846 = vmatpush2.msra.mxu0 0.0
        %847 = vmatprep.subr.mxu0 0.0
        %848 = vmatpush2.msra.mxu0 0.0
        %849 = vmatprep.subr.mxu0 0.0
        %850 = vmatpush2.msra.mxu0 0.0
        %851 = vmatprep.subr.mxu0 0.0
        %852 = vmatpush2.msra.mxu0 0.0
        %853 = vmatprep.subr.mxu0 0.0
        %854 = vmatpush2.msra.mxu0 0.0
        %855 = vmatprep.subr.mxu0 0.0
        %856 = vmatpush2.msra.mxu0 0.0
        %857 = vmatprep.subr.mxu0 0.0
        %858 = vmatpush2.msra.mxu0 0.0
        %859 = vmatprep.mubr.f32.mxu0 0.0
        %860 = vmatmul.mubr.f32.gmra.mxu0 %v793
        %v861 = vpop.f32.mrf.mxu0
        %v862 = vadd.f32 0.0, %v861
        %v863 = vpop.f32.mrf.mxu0
        %864 = vdwg.mxu0
        %v865 = vmul.f32 %v862, %v788
        %867 = vrot.lane.b32.xlu0 %v865, 16
        %v868 = vpop.permute.xlu0 %867
        %vm870 = vcmask 195712
        %871 = vst.msk [vmem:[#allocation2] sm:$0xff] %vm870, %v868
        %872 = vrot.lane.b32.xlu0 %v352, 104
        %v873 = vpop.permute.xlu0 %872
        %874 = vrot.lane.b32.xlu0 %v352, 72
        %v875 = vpop.permute.xlu0 %874
        %v876 = vsel %vm358, %v873, 0
        %v878 = vsel %vm358, %v875, 0
        %880 = vmatprep.subr.mxu0 0.0
        %881 = vmatpush1.xpose.msra.mxu0 0.0
        %882 = vmatprep.subr.mxu0 0.0
        %883 = vmatpush1.xpose.msra.mxu0 0.0
        %884 = vmatprep.subr.mxu0 0.0
        %885 = vmatpush1.xpose.msra.mxu0 0.0
        %886 = vmatprep.subr.mxu0 0.0
        %887 = vmatpush1.xpose.msra.mxu0 0.0
        %888 = vmatprep.subr.mxu0 0.0
        %889 = vmatpush1.xpose.msra.mxu0 0.0
        %890 = vmatprep.subr.mxu0 0.0
        %891 = vmatpush1.xpose.msra.mxu0 0.0
        %892 = vmatprep.subr.mxu0 0.0
        %893 = vmatpush1.xpose.msra.mxu0 0.0
        %894 = vmatprep.subr.mxu0 0.0
        %895 = vmatpush1.xpose.msra.mxu0 0.0
        %896 = vmatprep.subr.mxu0 0.0
        %897 = vmatpush1.xpose.msra.mxu0 0.0
        %898 = vmatprep.subr.mxu0 0.0
        %899 = vmatpush1.xpose.msra.mxu0 0.0
        %900 = vmatprep.subr.mxu0 0.0
        %901 = vmatpush1.xpose.msra.mxu0 0.0
        %902 = vmatprep.subr.mxu0 0.0
        %903 = vmatpush1.xpose.msra.mxu0 0.0
        %904 = vmatprep.subr.mxu0 0.0
        %905 = vmatpush1.xpose.msra.mxu0 0.0
        %906 = vmatprep.subr.mxu0 0.0
        %907 = vmatpush1.xpose.msra.mxu0 0.0
        %908 = vmatprep.subr.mxu0 0.0
        %909 = vmatpush1.xpose.msra.mxu0 0.0
        %910 = vmatprep.subr.mxu0 0.0
        %911 = vmatpush1.xpose.msra.mxu0 %v878
        %912 = vmatprep.subr.mxu0 0.0
        %913 = vmatpush2.xpose.msra.mxu0 0.0
        %914 = vmatprep.subr.mxu0 0.0
        %915 = vmatpush2.xpose.msra.mxu0 0.0
        %916 = vmatprep.subr.mxu0 0.0
        %917 = vmatpush2.xpose.msra.mxu0 0.0
        %918 = vmatprep.subr.mxu0 0.0
        %919 = vmatpush2.xpose.msra.mxu0 0.0
        %920 = vmatprep.subr.mxu0 0.0
        %921 = vmatpush2.xpose.msra.mxu0 0.0
        %922 = vmatprep.subr.mxu0 0.0
        %923 = vmatpush2.xpose.msra.mxu0 0.0
        %924 = vmatprep.subr.mxu0 0.0
        %925 = vmatpush2.xpose.msra.mxu0 0.0
        %926 = vmatprep.subr.mxu0 0.0
        %927 = vmatpush2.xpose.msra.mxu0 0.0
        %928 = vmatprep.subr.mxu0 0.0
        %929 = vmatpush2.xpose.msra.mxu0 0.0
        %930 = vmatprep.subr.mxu0 0.0
        %931 = vmatpush2.xpose.msra.mxu0 0.0
        %932 = vmatprep.subr.mxu0 0.0
        %933 = vmatpush2.xpose.msra.mxu0 0.0
        %934 = vmatprep.subr.mxu0 0.0
        %935 = vmatpush2.xpose.msra.mxu0 0.0
        %936 = vmatprep.subr.mxu0 0.0
        %937 = vmatpush2.xpose.msra.mxu0 0.0
        %938 = vmatprep.subr.mxu0 0.0
        %939 = vmatpush2.xpose.msra.mxu0 0.0
        %940 = vmatprep.subr.mxu0 0.0
        %941 = vmatpush2.xpose.msra.mxu0 0.0
        %942 = vmatprep.subr.mxu0 0.0
        %943 = vmatpush2.xpose.msra.mxu0 0.0
        %944 = vmatprep.mubr.f32.mxu0 0.0
        %945 = vmatmul.mubr.f32.gmra.mxu0 %v876
        %v946 = vpop.f32.mrf.mxu0
        %v947 = vadd.f32 0.0, %v946
        %v948 = vpop.f32.mrf.mxu0
        %949 = vdwg.mxu0
        %v950 = vsel %vm358, %v947, -inf
        %951 = vmax.xlane.f32.xlu0 %v950
        %v952 = vpop.xlane.xlu0 %951
        %v953 = vsub.f32 %v947, %v952
        %v954 = vmul.f32 %v953, 1.442695
        %v955 = vpow.pop %v954
        %v956 = vsel %vm358, %v955, 0.0
        %957 = vadd.xlane.f32.xlu0 %v956
        %v958 = vpop.xlane.xlu0 %957
        %v959 = vrcp.pop %v958
        %v960 = vmul.f32 %v958, %v959
        %v961 = vsub.f32 2.0, %v960
        %v962 = vmul.f32 %v959, %v961
        %963 = vrot.lane.b32.xlu0 %v352, 40
        %v964 = vpop.permute.xlu0 %963
        %v967 = vsel %vm358, %v955, 0
        %969 = vmatprep.subr.mxu0 0.0
        %970 = vmatpush1.msra.mxu0 0.0
        %971 = vmatprep.subr.mxu0 0.0
        %972 = vmatpush1.msra.mxu0 0.0
        %973 = vmatprep.subr.mxu0 0.0
        %974 = vmatpush1.msra.mxu0 0.0
        %975 = vmatprep.subr.mxu0 0.0
        %976 = vmatpush1.msra.mxu0 0.0
        %977 = vmatprep.subr.mxu0 0.0
        %978 = vmatpush1.msra.mxu0 0.0
        %979 = vmatprep.subr.mxu0 0.0
        %980 = vmatpush1.msra.mxu0 0.0
        %981 = vmatprep.subr.mxu0 0.0
        %982 = vmatpush1.msra.mxu0 0.0
        %983 = vmatprep.subr.mxu0 0.0
        %984 = vmatpush1.msra.mxu0 0.0
        %985 = vmatprep.subr.mxu0 0.0
        %986 = vmatpush1.msra.mxu0 0.0
        %987 = vmatprep.subr.mxu0 0.0
        %988 = vmatpush1.msra.mxu0 0.0
        %989 = vmatprep.subr.mxu0 0.0
        %990 = vmatpush1.msra.mxu0 0.0
        %991 = vmatprep.subr.mxu0 0.0
        %992 = vmatpush1.msra.mxu0 0.0
        %993 = vmatprep.subr.mxu0 0.0
        %994 = vmatpush1.msra.mxu0 0.0
        %995 = vmatprep.subr.mxu0 0.0
        %996 = vmatpush1.msra.mxu0 0.0
        %997 = vmatprep.subr.mxu0 0.0
        %998 = vmatpush1.msra.mxu0 0.0
        %999 = vmatprep.subr.mxu0 0.0
        %1000 = vmatpush1.msra.mxu0 %v964
        %1001 = vmatprep.subr.mxu0 0.0
        %1002 = vmatpush2.msra.mxu0 0.0
        %1003 = vmatprep.subr.mxu0 0.0
        %1004 = vmatpush2.msra.mxu0 0.0
        %1005 = vmatprep.subr.mxu0 0.0
        %1006 = vmatpush2.msra.mxu0 0.0
        %1007 = vmatprep.subr.mxu0 0.0
        %1008 = vmatpush2.msra.mxu0 0.0
        %1009 = vmatprep.subr.mxu0 0.0
        %1010 = vmatpush2.msra.mxu0 0.0
        %1011 = vmatprep.subr.mxu0 0.0
        %1012 = vmatpush2.msra.mxu0 0.0
        %1013 = vmatprep.subr.mxu0 0.0
        %1014 = vmatpush2.msra.mxu0 0.0
        %1015 = vmatprep.subr.mxu0 0.0
        %1016 = vmatpush2.msra.mxu0 0.0
        %1017 = vmatprep.subr.mxu0 0.0
        %1018 = vmatpush2.msra.mxu0 0.0
        %1019 = vmatprep.subr.mxu0 0.0
        %1020 = vmatpush2.msra.mxu0 0.0
        %1021 = vmatprep.subr.mxu0 0.0
        %1022 = vmatpush2.msra.mxu0 0.0
        %1023 = vmatprep.subr.mxu0 0.0
        %1024 = vmatpush2.msra.mxu0 0.0
        %1025 = vmatprep.subr.mxu0 0.0
        %1026 = vmatpush2.msra.mxu0 0.0
        %1027 = vmatprep.subr.mxu0 0.0
        %1028 = vmatpush2.msra.mxu0 0.0
        %1029 = vmatprep.subr.mxu0 0.0
        %1030 = vmatpush2.msra.mxu0 0.0
        %1031 = vmatprep.subr.mxu0 0.0
        %1032 = vmatpush2.msra.mxu0 0.0
        %1033 = vmatprep.mubr.f32.mxu0 0.0
        %1034 = vmatmul.mubr.f32.gmra.mxu0 %v967
        %v1035 = vpop.f32.mrf.mxu0
        %v1036 = vadd.f32 0.0, %v1035
        %v1037 = vpop.f32.mrf.mxu0
        %1038 = vdwg.mxu0
        %v1039 = vmul.f32 %v1036, %v962
        %1041 = vrot.lane.b32.xlu0 %v1039, 24
        %v1042 = vpop.permute.xlu0 %1041
        %vm1044 = vcmask 261312
        %1045 = vst.msk [vmem:[#allocation2] sm:$0xff] %vm1044, %v1042
        %v1046 = vld [vmem:[#allocation2] sm:$0xff]
        %v1047 = vld [vmem:[#allocation8] sm:$0xff]
        %v1048 = vld [vmem:[#allocation8 + $0x8] sm:$0xff]
        %v1049 = vld [vmem:[#allocation8 + $0x10] sm:$0xff]
        %v1050 = vld [vmem:[#allocation8 + $0x18] sm:$0xff]
        %v1051 = vld [vmem:[%s4] sm:$0x1]
        %v1053 = vlaneseq
        %v1054 = vshrl.u32 %v1053, 7
        %v1055 = vsub.s32 0, %v1054
        %v1056 = vrot.slane %v1051, %v1055
        %v1059 = vsel %vm281, %v1046, 0
        %1061 = vmatprep.subr.mxu0 0.0
        %1062 = vmatpush1.msra.mxu0 0.0
        %1063 = vmatprep.subr.mxu0 0.0
        %1064 = vmatpush1.msra.mxu0 0.0
        %1065 = vmatprep.subr.mxu0 0.0
        %1066 = vmatpush1.msra.mxu0 0.0
        %1067 = vmatprep.subr.mxu0 0.0
        %1068 = vmatpush1.msra.mxu0 0.0
        %1069 = vmatprep.subr.mxu0 0.0
        %1070 = vmatpush1.msra.mxu0 0.0
        %1071 = vmatprep.subr.mxu0 0.0
        %1072 = vmatpush1.msra.mxu0 0.0
        %1073 = vmatprep.subr.mxu0 0.0
        %1074 = vmatpush1.msra.mxu0 0.0
        %1075 = vmatprep.subr.mxu0 0.0
        %1076 = vmatpush1.msra.mxu0 0.0
        %1077 = vmatprep.subr.mxu0 0.0
        %1078 = vmatpush1.msra.mxu0 0.0
        %1079 = vmatprep.subr.mxu0 0.0
        %1080 = vmatpush1.msra.mxu0 0.0
        %1081 = vmatprep.subr.mxu0 0.0
        %1082 = vmatpush1.msra.mxu0 0.0
        %1083 = vmatprep.subr.mxu0 0.0
        %1084 = vmatpush1.msra.mxu0 0.0
        %1085 = vmatprep.subr.mxu0 0.0
        %1086 = vmatpush1.msra.mxu0 %v1050
        %1087 = vmatprep.subr.mxu0 0.0
        %1088 = vmatpush1.msra.mxu0 %v1049
        %1089 = vmatprep.subr.mxu0 0.0
        %1090 = vmatpush1.msra.mxu0 %v1048
        %1091 = vmatprep.subr.mxu0 0.0
        %1092 = vmatpush1.msra.mxu0 %v1047
        %1093 = vmatprep.subr.mxu0 0.0
        %1094 = vmatpush2.msra.mxu0 0.0
        %1095 = vmatprep.subr.mxu0 0.0
        %1096 = vmatpush2.msra.mxu0 0.0
        %1097 = vmatprep.subr.mxu0 0.0
        %1098 = vmatpush2.msra.mxu0 0.0
        %1099 = vmatprep.subr.mxu0 0.0
        %1100 = vmatpush2.msra.mxu0 0.0
        %1101 = vmatprep.subr.mxu0 0.0
        %1102 = vmatpush2.msra.mxu0 0.0
        %1103 = vmatprep.subr.mxu0 0.0
        %1104 = vmatpush2.msra.mxu0 0.0
        %1105 = vmatprep.subr.mxu0 0.0
        %1106 = vmatpush2.msra.mxu0 0.0
        %1107 = vmatprep.subr.mxu0 0.0
        %1108 = vmatpush2.msra.mxu0 0.0
        %1109 = vmatprep.subr.mxu0 0.0
        %1110 = vmatpush2.msra.mxu0 0.0
        %1111 = vmatprep.subr.mxu0 0.0
        %1112 = vmatpush2.msra.mxu0 0.0
        %1113 = vmatprep.subr.mxu0 0.0
        %1114 = vmatpush2.msra.mxu0 0.0
        %1115 = vmatprep.subr.mxu0 0.0
        %1116 = vmatpush2.msra.mxu0 0.0
        %1117 = vmatprep.subr.mxu0 0.0
        %1118 = vmatpush2.msra.mxu0 0.0
        %1119 = vmatprep.subr.mxu0 0.0
        %1120 = vmatpush2.msra.mxu0 0.0
        %1121 = vmatprep.subr.mxu0 0.0
        %1122 = vmatpush2.msra.mxu0 0.0
        %1123 = vmatprep.subr.mxu0 0.0
        %1124 = vmatpush2.msra.mxu0 0.0
        %1125 = vmatprep.mubr.f32.mxu0 0.0
        %1126 = vmatmul.mubr.f32.gmra.mxu0 %v1059
        %v1127 = vpop.f32.mrf.mxu0
        %v1128 = vadd.f32 %v1056, %v1127
        %v1129 = vpop.f32.mrf.mxu0
        %1130 = vdwg.mxu0
        %1131 = vst.msk [vmem:[%s268] sm:$0xff] %vm281, %v1128
        %s1132 = sand.u32 %s141, 1
        %s1133 = scalar_lea.sflag [#allocation5], %s1132
        %s1134 = sand.u32 %s141, 1
        %s1135 = smul.addr %s1134, 8
        %s1136 = scalar_lea.vmem [#allocation9], %s1135
        // Predicated region
        $region53: #{tpu_custom_call.1} parent=39 // pred_check
          %p1137 = pneg %p151
        $region54: #{tpu_custom_call.1} parent=39 // pred_check_branch
          %1139 = sbr.rel (%p1137) target = $region56
        $region55: #{tpu_custom_call.1} parent=39 // pred_region
          %s1141 = ssub.s32 128, 128
          %1142 = vsyncadd %s1133, %s1141
          %s1143 = smul.addr %s23, 128
          %s1144 = scalar_lea.hbm %s5, %s1143
          %s1146 = sshll.u32 %s1136, 4
          %s1147 = int_to_ptr.vmem [resolvable:$true] %s1146
          %1149 = dma.vmem_to_hbm [thread:$0]  %s1147, 128, %s1144, %s1133
        $region56: #{tpu_custom_call.1} parent=39 // pred_fallthru
          _
      $region40: #{tpu_custom_call.1} parent=5 // pred_fallthru
        _
      %p1150 = scmp.le.s32.totalorder 2, %s18
      // Predicated region
      $region57: #{tpu_custom_call.1} parent=5 // pred_check
        %p1151 = pneg %p1150
      $region58: #{tpu_custom_call.1} parent=5 // pred_check_branch
        %1153 = sbr.rel (%p1151) target = $region60
      $region59: #{tpu_custom_call.1} parent=5 // pred_region
        %s1154 = ssub.s32 %s18, 2
        // Predicated region
        $region61: #{tpu_custom_call.1} parent=59 // pred_check
          %p1155 = pneg %p157
        $region62: #{tpu_custom_call.1} parent=59 // pred_check_branch
          %1157 = sbr.rel (%p1155) target = $region64
        $region63: #{tpu_custom_call.1} parent=59 // pred_region
          %s1158 = sand.u32 %s142, 1
          %s1159 = scalar_lea.sflag [#allocation5], %s1158
          %s1160 = sand.u32 %s142, 1
          %s1161 = smul.addr %s1160, 8
          %s1162 = scalar_lea.vmem [#allocation9], %s1161
          %1163 = dma.done %s1159, 128
        $region64: #{tpu_custom_call.1} parent=59 // pred_fallthru
          _
      $region60: #{tpu_custom_call.1} parent=5 // pred_fallthru
        _
    $region6: #{tpu_custom_call.1} parent=1 // loop_footer
      %s22 = sadd.s32 1, %s18
    $region7: #{tpu_custom_call.1} parent=1 // loop_footer_branch
      %17 = sbr.rel target = $region3
    $region8: #{tpu_custom_call.1} parent=1 // loop_exit
      _
    %1164 = vsyncpa [#allocation4], 1
    %s1165 = scalar_lea.sflag [#allocation4], 1
    %1166 = vsyncpa %s1165, 1
    %1167 = vsyncpa [#allocation7], 1
    %1168 = vsyncpa [#allocation5], 1
    %s1169 = scalar_lea.sflag [#allocation5], 1
    %1170 = vsyncpa %s1169, 1

</llo_original>
